<compile_context>
chip_gen: v5e
topology: v5e:2x2
jax: 0.10.0
libtpu: 0.0.40
codegen_flags: <defaults>
</compile_context>

<pallas_src>
import functools

import jax
import jax.numpy as jnp
from jax.experimental import pallas as pl
from jax.experimental.pallas import tpu as pltpu


def _blur_fft_kernel(cols_ref, lmat_ref, arow_ref, ccolt_ref, out_ref, *,
                     n_chan, img_h, compute_dtype):
    # Stage 1 -- Embed conv as a single folded contraction on the MXU:
    #   (Cout*H, Cin*Hp*K) @ (Cin*Hp*K, W) -> (Cout*H, W), f32 accumulation.
    x = jnp.dot(lmat_ref[...], cols_ref[0],
                preferred_element_type=jnp.float32)                 # (Cout*H, W) f32

    # Stage 2 -- Gaussian blur == circular conv with the rolled PSF (FFT-equivalent),
    # separable: columns via X @ C^T, then rows via A @ X per channel.
    y = jnp.dot(x.astype(compute_dtype), ccolt_ref[...],
                preferred_element_type=jnp.float32)                 # (Cout*H, W) f32
    yc = y.astype(compute_dtype)
    a = arow_ref[...]
    rows = []
    for c in range(n_chan):                                         # tiny static unroll
        rows.append(jnp.dot(a, yc[c * img_h:(c + 1) * img_h, :],
                            preferred_element_type=jnp.float32))
    out_ref[0] = jnp.concatenate(rows, axis=0).astype(out_ref.dtype)


def make_embed_weight(nin, embdsize, k=9):
    # Embed.__init__ (learned=True): 0 * xavier_uniform (== zeros) + Dirac kernels on the
    # diagonal of the first 3 (out, in) channel pairs.
    w = jnp.zeros((nin, embdsize, k, k), jnp.float32)
    for c in range(min(3, nin, embdsize)):
        w = w.at[c, c, k // 2, k // 2].set(1.0)
    return w


def _psf_1d(n, sigma):
    # 1-D separable factor of psfGauss, normalised, then rolled by (1 - n//2)
    # exactly like torch.roll(P, shifts=center).
    x = jnp.arange(-n // 2 + 1, n // 2 + 1, dtype=jnp.float32)
    g = jnp.exp(-x ** 2 / (2.0 * sigma ** 2))
    g = g / jnp.sum(g)
    return jnp.roll(g, 1 - n // 2)


def blur_fft_forward(I, emb_weight, s=(2.0, 2.0), compute_dtype=jnp.bfloat16):
    """Pallas equivalent of blurFFT.forward(I, emb=True) with dim == H == W."""
    B, Cin, H, W = I.shape
    Cout, Cin_w, K, K2 = emb_weight.shape
    assert Cin == Cin_w and K == K2 and H == W
    pad = K // 2
    Hp = H + 2 * pad                                    # = H + K - 1
    J = Cin * Hp * K

    # ---- glue (plain JAX): operand layouts for the fused kernel --------------------
    # kx-only im2col of the zero-padded image: cols[b, (cin, r, kx), w] = Ipad[b, cin, r, w+kx]
    ipad = jnp.pad(I, ((0, 0), (0, 0), (pad, pad), (pad, pad)))
    cols = jnp.stack([ipad[:, :, :, kx:kx + W] for kx in range(K)], axis=3)
    cols = cols.reshape(B, J, W).astype(compute_dtype)

    # banded conv-weight matrix: L[(c, h), (cin, r, kx)] = W[c, cin, r - h, kx] if 0 <= r-h < K
    h_idx = jnp.arange(H)
    r_idx = jnp.arange(Hp)
    ky = r_idx[None, :] - h_idx[:, None]                             # (H, Hp)
    valid = (ky >= 0) & (ky < K)
    lmat = emb_weight[:, :, jnp.clip(ky, 0, K - 1), :]               # (Cout, Cin, H, Hp, K)
    lmat = jnp.where(valid[None, None, :, :, None], lmat, 0.0)
    lmat = jnp.transpose(lmat, (0, 2, 1, 3, 4)).reshape(Cout * H, J).astype(compute_dtype)

    # circulant blur matrices from the rolled separable PSF (exact FFT-blur equivalent)
    kr = _psf_1d(H, s[0])                                            # PSF dim 0 -> image rows
    kc = _psf_1d(W, s[1])                                            # PSF dim 1 -> image cols
    arow = kr[(h_idx[:, None] - h_idx[None, :]) % H].astype(compute_dtype)   # (H, H)
    w_idx = jnp.arange(W)
    ccolt = kc[(w_idx[None, :] - w_idx[:, None]) % W].astype(compute_dtype)  # (W, W), pre-transposed

    # ---- fused Pallas kernel: conv + separable circular blur, grid parallel over batch
    out = pl.pallas_call(
        functools.partial(_blur_fft_kernel, n_chan=Cout, img_h=H,
                          compute_dtype=compute_dtype),
        out_shape=jax.ShapeDtypeStruct((B, Cout * H, W), jnp.float32),
        grid_spec=pltpu.PrefetchScalarGridSpec(
            num_scalar_prefetch=0,
            grid=(B,),
            in_specs=[
                pl.BlockSpec((1, J, W), lambda b: (b, 0, 0)),        # per-batch image columns
                pl.BlockSpec((Cout * H, J), lambda b: (0, 0)),       # conv weight: resident
                pl.BlockSpec((H, H), lambda b: (0, 0)),              # row-blur circulant: resident
                pl.BlockSpec((W, W), lambda b: (0, 0)),              # col-blur circulant: resident
            ],
            out_specs=pl.BlockSpec((1, Cout * H, W), lambda b: (b, 0, 0)),
        ),
        compiler_params=pltpu.CompilerParams(
            dimension_semantics=("parallel",)),
    )(cols, lmat, arow, ccolt)                                       # (B, Cout*H, W)

    return out.reshape(B, Cout, H, W)


def reference_forward(I, emb_weight, s=(2.0, 2.0)):
    # direct jnp translation of blurFFT.forward(I, emb=True)
    pad = emb_weight.shape[-1] // 2
    Ic = jax.lax.conv_general_dilated(
        I, emb_weight, window_strides=(1, 1),
        padding=[(pad, pad), (pad, pad)],
        dimension_numbers=("NCHW", "OIHW", "NCHW"))
    n = I.shape[-1]
    x = jnp.arange(-n // 2 + 1, n // 2 + 1, dtype=jnp.float32)
    X, Y = jnp.meshgrid(x, x, indexing="ij")            # torch.meshgrid default is 'ij'
    P = jnp.exp(-X ** 2 / (2 * s[0] ** 2) - Y ** 2 / (2 * s[1] ** 2))
    P = P / jnp.sum(P)
    S = jnp.fft.fft2(jnp.roll(P, shift=(1 - n // 2, 1 - n // 2), axis=(0, 1)))[None, None]
    return jnp.real(jnp.fft.ifft2(S * jnp.fft.fft2(Ic)))


if __name__ == "__main__":
    key = jax.random.PRNGKey(0)
    B, embdsize, nin = 2, 4, 3        # batch, conv in-channels (embdsize), out-channels (nin)
    dim = 16                          # blurFFT.dim == spatial size (H == W == dim)

    I = jax.random.normal(key, (B, embdsize, dim, dim), dtype=jnp.float32)
    weight = make_embed_weight(nin, embdsize, k=9)

    ref = reference_forward(I, weight)

    # f32 MXU path: tight correctness check against the FFT reference.
    out_f32 = jax.block_until_ready(blur_fft_forward(I, weight, compute_dtype=jnp.float32))
    assert out_f32.shape == (B, nin, dim, dim)
    assert float(jnp.max(jnp.abs(out_f32 - ref))) < 1e-4

    # bf16 MXU path (perf configuration from the review): loose tolerance.
    out_bf16 = jax.block_until_ready(blur_fft_forward(I, weight, compute_dtype=jnp.bfloat16))
    assert out_bf16.shape == (B, nin, dim, dim)
    assert float(jnp.max(jnp.abs(out_bf16 - ref))) < 1e-1

    print("KERNEL_OK")
</pallas_src>

<mosaic_0001>
module attributes {stable_mosaic.version = 11 : i64} {
  func.func @_blur_fft_kernel(%arg0: i32, %arg1: memref<1x864x16xf32, #tpu.memory_space<vmem>>, %arg2: memref<48x864xf32, #tpu.memory_space<vmem>>, %arg3: memref<16x16xf32, #tpu.memory_space<vmem>>, %arg4: memref<16x16xf32, #tpu.memory_space<vmem>>, %arg5: memref<1x48x16xf32, #tpu.memory_space<vmem>>) attributes {dimension_semantics = [#tpu.dimension_semantics<parallel>], iteration_bounds = array<i64: 2>, scalar_prefetch = 0 : i64, scratch_operands = 0 : i64, tpu.core_type = #tpu.core_type<tc>, window_params = [{transform_indices = @transform_0, window_bounds = array<i64: 1, 864, 16>}, {pipeline_mode = #tpu.pipeline_mode<synchronous>, transform_indices = @transform_1, window_bounds = array<i64: 48, 864>}, {pipeline_mode = #tpu.pipeline_mode<synchronous>, transform_indices = @transform_2, window_bounds = array<i64: 16, 16>}, {pipeline_mode = #tpu.pipeline_mode<synchronous>, transform_indices = @transform_3, window_bounds = array<i64: 16, 16>}, {transform_indices = @transform_4, window_bounds = array<i64: 1, 48, 16>}]} {
    %c0 = arith.constant 0 : index
    %c0_0 = arith.constant 0 : index
    %0 = vector.load %arg2[%c0, %c0_0] : memref<48x864xf32, #tpu.memory_space<vmem>>, vector<48x864xf32>
    %c0_1 = arith.constant 0 : index
    %c0_2 = arith.constant 0 : index
    %c0_3 = arith.constant 0 : index
    %1 = vector.load %arg1[%c0_1, %c0_2, %c0_3] : memref<1x864x16xf32, #tpu.memory_space<vmem>>, vector<1x864x16xf32>
    %2 = vector.shape_cast %1 : vector<1x864x16xf32> to vector<864x16xf32>
    %cst = arith.constant dense<0.000000e+00> : vector<48x16xf32>
    %3 = tpu.matmul %0, %2, %cst {dimension_numbers = #tpu.dot_dimension_numbers<[1], [0], [0], [1], [0, 0, 1, 1], [], []>} : vector<48x864xf32>, vector<864x16xf32>, vector<48x16xf32> -> vector<48x16xf32>
    %c0_4 = arith.constant 0 : index
    %c0_5 = arith.constant 0 : index
    %4 = vector.load %arg4[%c0_4, %c0_5] : memref<16x16xf32, #tpu.memory_space<vmem>>, vector<16x16xf32>
    %cst_6 = arith.constant dense<0.000000e+00> : vector<48x16xf32>
    %5 = tpu.matmul %3, %4, %cst_6 {dimension_numbers = #tpu.dot_dimension_numbers<[1], [0], [0], [1], [0, 0, 1, 1], [], []>} : vector<48x16xf32>, vector<16x16xf32>, vector<48x16xf32> -> vector<48x16xf32>
    %c0_7 = arith.constant 0 : index
    %c0_8 = arith.constant 0 : index
    %6 = vector.load %arg3[%c0_7, %c0_8] : memref<16x16xf32, #tpu.memory_space<vmem>>, vector<16x16xf32>
    %7 = vector.extract_strided_slice %5 {offsets = [0, 0], sizes = [16, 16], strides = [1, 1]} : vector<48x16xf32> to vector<16x16xf32>
    %cst_9 = arith.constant dense<0.000000e+00> : vector<16x16xf32>
    %8 = tpu.matmul %6, %7, %cst_9 {dimension_numbers = #tpu.dot_dimension_numbers<[1], [0], [0], [1], [0, 0, 1, 1], [], []>} : vector<16x16xf32>, vector<16x16xf32>, vector<16x16xf32> -> vector<16x16xf32>
    %9 = vector.extract_strided_slice %5 {offsets = [16, 0], sizes = [16, 16], strides = [1, 1]} : vector<48x16xf32> to vector<16x16xf32>
    %cst_10 = arith.constant dense<0.000000e+00> : vector<16x16xf32>
    %10 = tpu.matmul %6, %9, %cst_10 {dimension_numbers = #tpu.dot_dimension_numbers<[1], [0], [0], [1], [0, 0, 1, 1], [], []>} : vector<16x16xf32>, vector<16x16xf32>, vector<16x16xf32> -> vector<16x16xf32>
    %11 = vector.extract_strided_slice %5 {offsets = [32, 0], sizes = [16, 16], strides = [1, 1]} : vector<48x16xf32> to vector<16x16xf32>
    %cst_11 = arith.constant dense<0.000000e+00> : vector<16x16xf32>
    %12 = tpu.matmul %6, %11, %cst_11 {dimension_numbers = #tpu.dot_dimension_numbers<[1], [0], [0], [1], [0, 0, 1, 1], [], []>} : vector<16x16xf32>, vector<16x16xf32>, vector<16x16xf32> -> vector<16x16xf32>
    %13 = tpu.concatenate %8, %10, %12 in 0 : vector<16x16xf32>, vector<16x16xf32>, vector<16x16xf32> -> vector<48x16xf32>
    %c0_12 = arith.constant 0 : index
    %c0_13 = arith.constant 0 : index
    %c0_14 = arith.constant 0 : index
    %14 = vector.load %arg5[%c0_12, %c0_13, %c0_14] : memref<1x48x16xf32, #tpu.memory_space<vmem>>, vector<1x48x16xf32>
    %15 = vector.shape_cast %14 : vector<1x48x16xf32> to vector<48x16xf32>
    %16 = vector.shape_cast %13 : vector<48x16xf32> to vector<1x48x16xf32>
    tpu.vector_store %arg5[%c0_12, %c0_13, %c0_14], %16 {strides = array<i32>} : memref<1x48x16xf32, #tpu.memory_space<vmem>>, vector<1x48x16xf32>,
    return
  }
  func.func @transform_0(%arg0: i32) -> (i32, i32, i32) {
    %c0_i32 = arith.constant 0 : i32
    %c0_i32_0 = arith.constant 0 : i32
    %c0_i32_1 = arith.constant 0 : i32
    return %arg0, %c0_i32, %c0_i32_0 : i32, i32, i32
  }
  func.func @transform_1(%arg0: i32) -> (i32, i32) {
    %c0_i32 = arith.constant 0 : i32
    %c0_i32_0 = arith.constant 0 : i32
    %c0_i32_1 = arith.constant 0 : i32
    return %c0_i32, %c0_i32_0 : i32, i32
  }
  func.func @transform_2(%arg0: i32) -> (i32, i32) {
    %c0_i32 = arith.constant 0 : i32
    %c0_i32_0 = arith.constant 0 : i32
    %c0_i32_1 = arith.constant 0 : i32
    return %c0_i32, %c0_i32_0 : i32, i32
  }
  func.func @transform_3(%arg0: i32) -> (i32, i32) {
    %c0_i32 = arith.constant 0 : i32
    %c0_i32_0 = arith.constant 0 : i32
    %c0_i32_1 = arith.constant 0 : i32
    return %c0_i32, %c0_i32_0 : i32, i32
  }
  func.func @transform_4(%arg0: i32) -> (i32, i32, i32) {
    %c0_i32 = arith.constant 0 : i32
    %c0_i32_0 = arith.constant 0 : i32
    %c0_i32_1 = arith.constant 0 : i32
    return %arg0, %c0_i32, %c0_i32_0 : i32, i32, i32
  }
}

</mosaic_0001>

<llo_original>
// kernel: tpu_custom_call.1
$region0: #{tpu_custom_call.1}
  #allocation0 [shape = 'u32[]', space=smem, size = 0x4, offset = 0x4, fixed_abs, tag = 'smem constant byte address 0x4 - core index']
  #allocation1 [shape = 'u32[72,128]{1,0:T(1,128)}', space=vmem, size = 0x9000, scoped, tag = 'internal scratch']
  %s0 = inlined_call_operand.vmem [shape: f32[2,864,16], index: 0, kind: input, shape index: {}]
  %s1 = inlined_call_operand.vmem [shape: f32[48,864], index: 1, kind: input, shape index: {}]
  %s2 = inlined_call_operand.vmem [shape: f32[16,16], index: 2, kind: input, shape index: {}]
  %s3 = inlined_call_operand.vmem [shape: f32[16,16], index: 3, kind: input, shape index: {}]
  %s4 = inlined_call_operand.vmem [shape: f32[2,48,16], index: 4, kind: output, shape index: {}]
  %s5 = sld [smem:[#allocation0]]
  $region49: #{tpu_custom_call.1} parent=0
    _
  %s7 = ssub.s32 1, %s5
  %s8 = scalar_select 0, %s7, %s5
  loop: start=0, step=1, limit=4
  $region2: #{tpu_custom_call.1} parent=0 // loop_pre_header
    _
  $region3: #{tpu_custom_call.1} parent=0 // loop_header
    %s10 = sphi 0, %s14
    %p11 = scmp.ge.s32.totalorder %s10, 4
    %s20 = sphi 0, %s22
    %s23 = sphi 0, %s20
    %s24 = sphi 0, %s23
    %s40 = sphi 0, %s24
    %s44 = sphi 0, %s44
    %s46 = sphi 0, %s44
    %s47 = sphi 0, %s46
    %s61 = sphi 0, %s47
    %s65 = sphi 0, %s65
    %s67 = sphi 0, %s65
    %s68 = sphi 0, %s67
    %s82 = sphi 0, %s68
    %s86 = sphi 0, %s86
    %s88 = sphi 0, %s86
    %s89 = sphi 0, %s88
    %s103 = sphi 0, %s89
    %s109 = sphi 0, %s111
    %s112 = sphi 0, %s109
    %s113 = sphi 0, %s112
    %s129 = sphi 0, %s113
  $region4: #{tpu_custom_call.1} parent=0 // loop_header_branch
    %13 = sbr.rel (%p11) target = $region8
  $region5: #{tpu_custom_call.1} parent=0 // loop_body
    %s15 = ssub.s32 %s10, 1
    %s16 = ssub.s32 %s10, 2
    %s17 = sadd.s32 %s10, 1
    %s18 = ssub.s32 %s10, %s17
    %p19 = scmp.eq.s32.totalorder %s18, 0
    %s21 = sadd.s32 %s20, 1
    %s22 = scalar_select %p19, %s20, %s21
    %p25 = pneg %p19
    %p26 = scmp.eq.s32.totalorder %s10, 1
    %p27 = por %p25, %p26
    %p28 = scmp.ne.s32.totalorder %s20, %s23
    %p29 = scmp.eq.s32.totalorder %s10, 0
    %p30 = por %p28, %p29
    %p31 = scmp.ne.s32.totalorder %s20, %s23
    %p32 = scmp.eq.s32.totalorder %s15, 1
    %p33 = por %p31, %p32
    %p34 = scmp.ne.s32.totalorder %s23, %s24
    %p35 = scmp.eq.s32.totalorder %s15, 0
    %p36 = por %p34, %p35
    %p37 = scmp.ne.s32.totalorder %s23, %s24
    %p38 = scmp.eq.s32.totalorder %s16, 1
    %p39 = por %p37, %p38
    %p41 = scmp.ne.s32.totalorder %s24, %s40
    %p42 = scmp.eq.s32.totalorder %s16, 0
    %p43 = por %p41, %p42
    %s45 = sadd.s32 %s44, 1
    %p48 = scmp.eq.s32.totalorder %s10, 1
    %p49 = scmp.ne.s32.totalorder %s44, %s46
    %p50 = scmp.eq.s32.totalorder %s10, 0
    %p51 = por %p49, %p50
    %p52 = scmp.ne.s32.totalorder %s44, %s46
    %p53 = scmp.eq.s32.totalorder %s15, 1
    %p54 = por %p52, %p53
    %p55 = scmp.ne.s32.totalorder %s46, %s47
    %p56 = scmp.eq.s32.totalorder %s15, 0
    %p57 = por %p55, %p56
    %p58 = scmp.ne.s32.totalorder %s46, %s47
    %p59 = scmp.eq.s32.totalorder %s16, 1
    %p60 = por %p58, %p59
    %p62 = scmp.ne.s32.totalorder %s47, %s61
    %p63 = scmp.eq.s32.totalorder %s16, 0
    %p64 = por %p62, %p63
    %s66 = sadd.s32 %s65, 1
    %p69 = scmp.eq.s32.totalorder %s10, 1
    %p70 = scmp.ne.s32.totalorder %s65, %s67
    %p71 = scmp.eq.s32.totalorder %s10, 0
    %p72 = por %p70, %p71
    %p73 = scmp.ne.s32.totalorder %s65, %s67
    %p74 = scmp.eq.s32.totalorder %s15, 1
    %p75 = por %p73, %p74
    %p76 = scmp.ne.s32.totalorder %s67, %s68
    %p77 = scmp.eq.s32.totalorder %s15, 0
    %p78 = por %p76, %p77
    %p79 = scmp.ne.s32.totalorder %s67, %s68
    %p80 = scmp.eq.s32.totalorder %s16, 1
    %p81 = por %p79, %p80
    %p83 = scmp.ne.s32.totalorder %s68, %s82
    %p84 = scmp.eq.s32.totalorder %s16, 0
    %p85 = por %p83, %p84
    %s87 = sadd.s32 %s86, 1
    %p90 = scmp.eq.s32.totalorder %s10, 1
    %p91 = scmp.ne.s32.totalorder %s86, %s88
    %p92 = scmp.eq.s32.totalorder %s10, 0
    %p93 = por %p91, %p92
    %p94 = scmp.ne.s32.totalorder %s86, %s88
    %p95 = scmp.eq.s32.totalorder %s15, 1
    %p96 = por %p94, %p95
    %p97 = scmp.ne.s32.totalorder %s88, %s89
    %p98 = scmp.eq.s32.totalorder %s15, 0
    %p99 = por %p97, %p98
    %p100 = scmp.ne.s32.totalorder %s88, %s89
    %p101 = scmp.eq.s32.totalorder %s16, 1
    %p102 = por %p100, %p101
    %p104 = scmp.ne.s32.totalorder %s89, %s103
    %p105 = scmp.eq.s32.totalorder %s16, 0
    %p106 = por %p104, %p105
    %s107 = ssub.s32 %s10, %s17
    %p108 = scmp.eq.s32.totalorder %s107, 0
    %s110 = sadd.s32 %s109, 1
    %s111 = scalar_select %p108, %s109, %s110
    %p114 = pneg %p108
    %p115 = scmp.eq.s32.totalorder %s10, 1
    %p116 = por %p114, %p115
    %p117 = scmp.ne.s32.totalorder %s109, %s112
    %p118 = scmp.eq.s32.totalorder %s10, 0
    %p119 = por %p117, %p118
    %p120 = scmp.ne.s32.totalorder %s109, %s112
    %p121 = scmp.eq.s32.totalorder %s15, 1
    %p122 = por %p120, %p121
    %p123 = scmp.ne.s32.totalorder %s112, %s113
    %p124 = scmp.eq.s32.totalorder %s15, 0
    %p125 = por %p123, %p124
    %p126 = scmp.ne.s32.totalorder %s112, %s113
    %p127 = scmp.eq.s32.totalorder %s16, 1
    %p128 = por %p126, %p127
    %p130 = scmp.ne.s32.totalorder %s113, %s129
    %p131 = scmp.eq.s32.totalorder %s16, 0
    %p132 = por %p130, %p131
    %p133 = scmp.le.s32.totalorder 1, %s10
    %p134 = scmp.lt.s32.totalorder %s10, 3
    %p135 = pnand %p133, %p134
    %p136 = pneg %p135
    // Predicated region
    $region9: #{tpu_custom_call.1} parent=5 // pred_check
      _
    $region10: #{tpu_custom_call.1} parent=5 // pred_check_branch
      %138 = sbr.rel (%p135) target = $region12
    $region11: #{tpu_custom_call.1} parent=5 // pred_region
      %s139 = ssub.s32 %s10, 1
      // Predicated region
      $region13: #{tpu_custom_call.1} parent=11 // pred_check
        %p140 = pneg %p57
      $region14: #{tpu_custom_call.1} parent=11 // pred_check_branch
        %142 = sbr.rel (%p140) target = $region16
      $region15: #{tpu_custom_call.1} parent=11 // pred_region
        _
      $region16: #{tpu_custom_call.1} parent=11 // pred_fallthru
        _
      // Predicated region
      $region17: #{tpu_custom_call.1} parent=11 // pred_check
        %p143 = pneg %p78
      $region18: #{tpu_custom_call.1} parent=11 // pred_check_branch
        %145 = sbr.rel (%p143) target = $region20
      $region19: #{tpu_custom_call.1} parent=11 // pred_region
        _
      $region20: #{tpu_custom_call.1} parent=11 // pred_fallthru
        _
      // Predicated region
      $region21: #{tpu_custom_call.1} parent=11 // pred_check
        %p146 = pneg %p99
      $region22: #{tpu_custom_call.1} parent=11 // pred_check_branch
        %148 = sbr.rel (%p146) target = $region24
      $region23: #{tpu_custom_call.1} parent=11 // pred_region
        _
      $region24: #{tpu_custom_call.1} parent=11 // pred_fallthru
        _
    $region12: #{tpu_custom_call.1} parent=5 // pred_fallthru
      _
    %p149 = scmp.lt.s32.totalorder %s10, 2
    // Predicated region
    $region25: #{tpu_custom_call.1} parent=5 // pred_check
      %p150 = pneg %p149
    $region26: #{tpu_custom_call.1} parent=5 // pred_check_branch
      %152 = sbr.rel (%p150) target = $region28
    $region27: #{tpu_custom_call.1} parent=5 // pred_region
      // Predicated region
      $region29: #{tpu_custom_call.1} parent=27 // pred_check
        %p153 = pneg %p30
      $region30: #{tpu_custom_call.1} parent=27 // pred_check_branch
        %155 = sbr.rel (%p153) target = $region32
      $region31: #{tpu_custom_call.1} parent=27 // pred_region
        %p156 = scmp.lt.s32.totalorder %s10, 1
        %s157 = scalar_select %p156, %s10, 1
        %s158 = smul.addr %s157, 108
        %s159 = smul.addr %s158, 8
        %s160 = scalar_lea.vmem %s0, %s159
      $region32: #{tpu_custom_call.1} parent=27 // pred_fallthru
        _
    $region28: #{tpu_custom_call.1} parent=5 // pred_fallthru
      _
    %p161 = scmp.le.s32.totalorder 1, %s10
    %p162 = scmp.lt.s32.totalorder %s10, 3
    %p163 = pnand %p161, %p162
    %p164 = pneg %p163
    // Predicated region
    $region33: #{tpu_custom_call.1} parent=5 // pred_check
      _
    $region34: #{tpu_custom_call.1} parent=5 // pred_check_branch
      %166 = sbr.rel (%p163) target = $region36
    $region35: #{tpu_custom_call.1} parent=5 // pred_region
      %s167 = ssub.s32 %s10, 1
      %p168 = scmp.lt.s32.totalorder %s15, 1
      %s169 = scalar_select %p168, %s15, 1
      %s170 = smul.addr %s169, 108
      %s171 = smul.addr %s170, 8
      %s172 = scalar_lea.vmem %s0, %s171
      %p173 = pneg %p36
      %p174 = pneg %p33
      %p175 = pneg %p57
      %p176 = pneg %p54
      %p177 = pneg %p78
      %p178 = pneg %p75
      %p179 = pneg %p99
      %p180 = pneg %p96
      %p181 = pneg %p125
      %p182 = pneg %p122
      %p183 = scmp.lt.s32.totalorder %s15, 1
      %s184 = scalar_select %p183, %s15, 1
      %s185 = smul.addr %s184, 6
      %s186 = smul.addr %s185, 8
      %s187 = scalar_lea.vmem %s4, %s186
      %p188 = scmp.lt.s32.totalorder %s15, 1
      %s189 = scalar_select %p188, %s15, 1
      %s190 = smul.addr %s189, 108
      %s191 = smul.addr %s190, 8
      %s192 = scalar_lea.vmem %s0, %s191
      %p193 = scmp.lt.s32.totalorder %s15, 1
      %s194 = scalar_select %p193, %s15, 1
      %s195 = smul.addr %s194, 6
      %s196 = smul.addr %s195, 8
      %s197 = scalar_lea.vmem %s4, %s196
      %v198 = vld [vmem:[%s1] sm:$0xff]
      %v199 = vld [vmem:[%s1 + $0x8] sm:$0xff]
      %v200 = vld [vmem:[%s1 + $0x10] sm:$0xff]
      %v201 = vld [vmem:[%s1 + $0x18] sm:$0xff]
      %v202 = vld [vmem:[%s1 + $0x20] sm:$0xff]
      %v203 = vld [vmem:[%s1 + $0x28] sm:$0xff]
      %v204 = vld [vmem:[%s1 + $0x30] sm:$0xff]
      %v205 = vld [vmem:[%s1 + $0x38] sm:$0xff]
      %v206 = vld [vmem:[%s1 + $0x40] sm:$0xff]
      %v207 = vld [vmem:[%s1 + $0x48] sm:$0xff]
      %v208 = vld [vmem:[%s1 + $0x50] sm:$0xff]
      %v209 = vld [vmem:[%s1 + $0x58] sm:$0xff]
      %v210 = vld [vmem:[%s1 + $0x60] sm:$0xff]
      %v211 = vld [vmem:[%s1 + $0x68] sm:$0xff]
      %v212 = vld [vmem:[%s1 + $0x70] sm:$0xff]
      %v213 = vld [vmem:[%s1 + $0x78] sm:$0xff]
      %v214 = vld [vmem:[%s1 + $0x80] sm:$0xff]
      %v215 = vld [vmem:[%s1 + $0x88] sm:$0xff]
      %v216 = vld [vmem:[%s1 + $0x90] sm:$0xff]
      %v217 = vld [vmem:[%s1 + $0x98] sm:$0xff]
      %v218 = vld [vmem:[%s1 + $0xa0] sm:$0xff]
      %v219 = vld [vmem:[%s1 + $0xa8] sm:$0xff]
      %v220 = vld [vmem:[%s1 + $0xb0] sm:$0xff]
      %v221 = vld [vmem:[%s1 + $0xb8] sm:$0xff]
      %v222 = vld [vmem:[%s1 + $0xc0] sm:$0xff]
      %v223 = vld [vmem:[%s1 + $0xc8] sm:$0xff]
      %v224 = vld [vmem:[%s1 + $0xd0] sm:$0xff]
      %v225 = vld [vmem:[%s1 + $0xd8] sm:$0xff]
      %v226 = vld [vmem:[%s1 + $0xe0] sm:$0xff]
      %v227 = vld [vmem:[%s1 + $0xe8] sm:$0xff]
      %v228 = vld [vmem:[%s1 + $0xf0] sm:$0xff]
      %v229 = vld [vmem:[%s1 + $0xf8] sm:$0xff]
      %v230 = vld [vmem:[%s1 + $0x100] sm:$0xff]
      %v231 = vld [vmem:[%s1 + $0x108] sm:$0xff]
      %v232 = vld [vmem:[%s1 + $0x110] sm:$0xff]
      %v233 = vld [vmem:[%s1 + $0x118] sm:$0xff]
      %v234 = vld [vmem:[%s1 + $0x120] sm:$0xff]
      %v235 = vld [vmem:[%s1 + $0x128] sm:$0xff]
      %v236 = vld [vmem:[%s1 + $0x130] sm:$0xff]
      %v237 = vld [vmem:[%s1 + $0x138] sm:$0xff]
      %v238 = vld [vmem:[%s1 + $0x140] sm:$0xff]
      %v239 = vld [vmem:[%s1 + $0x148] sm:$0xff]
      %v240 = vld [vmem:[%s192] sm:$0xff]
      %v241 = vld [vmem:[%s192 + $0x8] sm:$0xff]
      %v242 = vld [vmem:[%s192 + $0x10] sm:$0xff]
      %v243 = vld [vmem:[%s192 + $0x18] sm:$0xff]
      %v244 = vld [vmem:[%s192 + $0x20] sm:$0xff]
      %v245 = vld [vmem:[%s192 + $0x28] sm:$0xff]
      %v246 = vld [vmem:[%s192 + $0x30] sm:$0xff]
      %v247 = vld [vmem:[%s192 + $0x38] sm:$0xff]
      %v248 = vld [vmem:[%s192 + $0x40] sm:$0xff]
      %v249 = vld [vmem:[%s192 + $0x48] sm:$0xff]
      %v250 = vld [vmem:[%s192 + $0x50] sm:$0xff]
      %v251 = vld [vmem:[%s192 + $0x58] sm:$0xff]
      %v252 = vld [vmem:[%s192 + $0x60] sm:$0xff]
      %v253 = vld [vmem:[%s192 + $0x68] sm:$0xff]
      %v254 = vld [vmem:[%s192 + $0x70] sm:$0xff]
      %v255 = vld [vmem:[%s192 + $0x78] sm:$0xff]
      %v256 = vld [vmem:[%s192 + $0x80] sm:$0xff]
      %v257 = vld [vmem:[%s192 + $0x88] sm:$0xff]
      %v258 = vld [vmem:[%s192 + $0x90] sm:$0xff]
      %v259 = vld [vmem:[%s192 + $0x98] sm:$0xff]
      %v260 = vld [vmem:[%s192 + $0xa0] sm:$0xff]
      %v261 = vld [vmem:[%s192 + $0xa8] sm:$0xff]
      %v262 = vld [vmem:[%s192 + $0xb0] sm:$0xff]
      %v263 = vld [vmem:[%s192 + $0xb8] sm:$0xff]
      %v264 = vld [vmem:[%s192 + $0xc0] sm:$0xff]
      %v265 = vld [vmem:[%s192 + $0xc8] sm:$0xff]
      %v266 = vld [vmem:[%s192 + $0xd0] sm:$0xff]
      %v267 = vld [vmem:[%s192 + $0xd8] sm:$0xff]
      %v268 = vld [vmem:[%s192 + $0xe0] sm:$0xff]
      %v269 = vld [vmem:[%s192 + $0xe8] sm:$0xff]
      %v270 = vld [vmem:[%s192 + $0xf0] sm:$0xff]
      %v271 = vld [vmem:[%s192 + $0xf8] sm:$0xff]
      %v272 = vld [vmem:[%s192 + $0x100] sm:$0xff]
      %v273 = vld [vmem:[%s192 + $0x108] sm:$0xff]
      %v274 = vld [vmem:[%s192 + $0x110] sm:$0xff]
      %v275 = vld [vmem:[%s192 + $0x118] sm:$0xff]
      %v276 = vld [vmem:[%s192 + $0x120] sm:$0xff]
      %v277 = vld [vmem:[%s192 + $0x128] sm:$0xff]
      %v278 = vld [vmem:[%s192 + $0x130] sm:$0xff]
      %v279 = vld [vmem:[%s192 + $0x138] sm:$0xff]
      %v280 = vld [vmem:[%s192 + $0x140] sm:$0xff]
      %v281 = vld [vmem:[%s192 + $0x148] sm:$0xff]
      %v282 = vld [vmem:[%s192 + $0x150] sm:$0xff]
      %v283 = vld [vmem:[%s192 + $0x158] sm:$0xff]
      %v284 = vld [vmem:[%s192 + $0x160] sm:$0xff]
      %v285 = vld [vmem:[%s192 + $0x168] sm:$0xff]
      %v286 = vld [vmem:[%s192 + $0x170] sm:$0xff]
      %v287 = vld [vmem:[%s192 + $0x178] sm:$0xff]
      %v288 = vld [vmem:[%s192 + $0x180] sm:$0xff]
      %v289 = vld [vmem:[%s192 + $0x188] sm:$0xff]
      %v290 = vld [vmem:[%s192 + $0x190] sm:$0xff]
      %v291 = vld [vmem:[%s192 + $0x198] sm:$0xff]
      %v292 = vld [vmem:[%s192 + $0x1a0] sm:$0xff]
      %v293 = vld [vmem:[%s192 + $0x1a8] sm:$0xff]
      %v294 = vld [vmem:[%s192 + $0x1b0] sm:$0xff]
      %v295 = vld [vmem:[%s192 + $0x1b8] sm:$0xff]
      %v296 = vld [vmem:[%s192 + $0x1c0] sm:$0xff]
      %v297 = vld [vmem:[%s192 + $0x1c8] sm:$0xff]
      %v298 = vld [vmem:[%s192 + $0x1d0] sm:$0xff]
      %v299 = vld [vmem:[%s192 + $0x1d8] sm:$0xff]
      %v300 = vld [vmem:[%s192 + $0x1e0] sm:$0xff]
      %v301 = vld [vmem:[%s192 + $0x1e8] sm:$0xff]
      %v302 = vld [vmem:[%s192 + $0x1f0] sm:$0xff]
      %v303 = vld [vmem:[%s192 + $0x1f8] sm:$0xff]
      %v304 = vld [vmem:[%s192 + $0x200] sm:$0xff]
      %v305 = vld [vmem:[%s192 + $0x208] sm:$0xff]
      %v306 = vld [vmem:[%s192 + $0x210] sm:$0xff]
      %v307 = vld [vmem:[%s192 + $0x218] sm:$0xff]
      %v308 = vld [vmem:[%s192 + $0x220] sm:$0xff]
      %v309 = vld [vmem:[%s192 + $0x228] sm:$0xff]
      %v310 = vld [vmem:[%s192 + $0x230] sm:$0xff]
      %v311 = vld [vmem:[%s192 + $0x238] sm:$0xff]
      %v312 = vld [vmem:[%s192 + $0x240] sm:$0xff]
      %v313 = vld [vmem:[%s192 + $0x248] sm:$0xff]
      %v314 = vld [vmem:[%s192 + $0x250] sm:$0xff]
      %v315 = vld [vmem:[%s192 + $0x258] sm:$0xff]
      %v316 = vld [vmem:[%s192 + $0x260] sm:$0xff]
      %v317 = vld [vmem:[%s192 + $0x268] sm:$0xff]
      %v318 = vld [vmem:[%s192 + $0x270] sm:$0xff]
      %v319 = vld [vmem:[%s192 + $0x278] sm:$0xff]
      %v320 = vld [vmem:[%s192 + $0x280] sm:$0xff]
      %v321 = vld [vmem:[%s192 + $0x288] sm:$0xff]
      %v322 = vld [vmem:[%s192 + $0x290] sm:$0xff]
      %v323 = vld [vmem:[%s192 + $0x298] sm:$0xff]
      %v324 = vld [vmem:[%s192 + $0x2a0] sm:$0xff]
      %v325 = vld [vmem:[%s192 + $0x2a8] sm:$0xff]
      %v326 = vld [vmem:[%s192 + $0x2b0] sm:$0xff]
      %v327 = vld [vmem:[%s192 + $0x2b8] sm:$0xff]
      %v328 = vld [vmem:[%s192 + $0x2c0] sm:$0xff]
      %v329 = vld [vmem:[%s192 + $0x2c8] sm:$0xff]
      %v330 = vld [vmem:[%s192 + $0x2d0] sm:$0xff]
      %v331 = vld [vmem:[%s192 + $0x2d8] sm:$0xff]
      %v332 = vld [vmem:[%s192 + $0x2e0] sm:$0xff]
      %v333 = vld [vmem:[%s192 + $0x2e8] sm:$0xff]
      %v334 = vld [vmem:[%s192 + $0x2f0] sm:$0xff]
      %v335 = vld [vmem:[%s192 + $0x2f8] sm:$0xff]
      %v336 = vld [vmem:[%s192 + $0x300] sm:$0xff]
      %v337 = vld [vmem:[%s192 + $0x308] sm:$0xff]
      %v338 = vld [vmem:[%s192 + $0x310] sm:$0xff]
      %v339 = vld [vmem:[%s192 + $0x318] sm:$0xff]
      %v340 = vld [vmem:[%s192 + $0x320] sm:$0xff]
      %v341 = vld [vmem:[%s192 + $0x328] sm:$0xff]
      %v342 = vld [vmem:[%s192 + $0x330] sm:$0xff]
      %v343 = vld [vmem:[%s192 + $0x338] sm:$0xff]
      %v344 = vld [vmem:[%s192 + $0x340] sm:$0xff]
      %v345 = vld [vmem:[%s192 + $0x348] sm:$0xff]
      %v346 = vld [vmem:[%s192 + $0x350] sm:$0xff]
      %v347 = vld [vmem:[%s192 + $0x358] sm:$0xff]
      %vm348 = vcmask 785408
      %v350 = vsel %vm348, %v204, 0
      %v353 = vsel %vm348, %v211, 0
      %v356 = vsel %vm348, %v218, 0
      %v359 = vsel %vm348, %v225, 0
      %v362 = vsel %vm348, %v232, 0
      %v365 = vsel %vm348, %v239, 0
      %367 = vmatpush.msra.mxu0 %v255
      %368 = vmatpush.msra.mxu0 %v254
      %369 = vmatpush.msra.mxu0 %v253
      %370 = vmatpush.msra.mxu0 %v252
      %371 = vmatpush.msra.mxu0 %v251
      %372 = vmatpush.msra.mxu0 %v250
      %373 = vmatpush.msra.mxu0 %v249
      %374 = vmatpush.msra.mxu0 %v248
      %375 = vmatpush.msra.mxu0 %v247
      %376 = vmatpush.msra.mxu0 %v246
      %377 = vmatpush.msra.mxu0 %v245
      %378 = vmatpush.msra.mxu0 %v244
      %379 = vmatpush.msra.mxu0 %v243
      %380 = vmatpush.msra.mxu0 %v242
      %381 = vmatpush.msra.mxu0 %v241
      %382 = vmatpush.msra.mxu0 %v240
      %383 = vmatmul.f32.gmra.mxu0 %v198
      %v384 = vpop.f32.mrf.mxu0
      %v385 = vadd.f32 0.0, %v384
      %386 = vmatmul.f32.gmra.mxu0 %v205
      %v387 = vpop.f32.mrf.mxu0
      %v388 = vadd.f32 0.0, %v387
      %389 = vmatmul.f32.gmra.mxu0 %v212
      %v390 = vpop.f32.mrf.mxu0
      %v391 = vadd.f32 0.0, %v390
      %392 = vmatmul.f32.gmra.mxu0 %v219
      %v393 = vpop.f32.mrf.mxu0
      %v394 = vadd.f32 0.0, %v393
      %395 = vmatmul.f32.gmra.mxu0 %v226
      %v396 = vpop.f32.mrf.mxu0
      %v397 = vadd.f32 0.0, %v396
      %398 = vmatmul.f32.gmra.mxu0 %v233
      %v399 = vpop.f32.mrf.mxu0
      %v400 = vadd.f32 0.0, %v399
      %401 = vdwg.mxu0
      %402 = vmatpush.msra.mxu0 %v271
      %403 = vmatpush.msra.mxu0 %v270
      %404 = vmatpush.msra.mxu0 %v269
      %405 = vmatpush.msra.mxu0 %v268
      %406 = vmatpush.msra.mxu0 %v267
      %407 = vmatpush.msra.mxu0 %v266
      %408 = vmatpush.msra.mxu0 %v265
      %409 = vmatpush.msra.mxu0 %v264
      %410 = vmatpush.msra.mxu0 %v263
      %411 = vmatpush.msra.mxu0 %v262
      %412 = vmatpush.msra.mxu0 %v261
      %413 = vmatpush.msra.mxu0 %v260
      %414 = vmatpush.msra.mxu0 %v259
      %415 = vmatpush.msra.mxu0 %v258
      %416 = vmatpush.msra.mxu0 %v257
      %417 = vmatpush.msra.mxu0 %v256
      %418 = vmatmul.f32.gmra.mxu0 %v199
      %v419 = vpop.f32.mrf.mxu0
      %v420 = vadd.f32 %v385, %v419
      %421 = vmatmul.f32.gmra.mxu0 %v206
      %v422 = vpop.f32.mrf.mxu0
      %v423 = vadd.f32 %v388, %v422
      %424 = vmatmul.f32.gmra.mxu0 %v213
      %v425 = vpop.f32.mrf.mxu0
      %v426 = vadd.f32 %v391, %v425
      %427 = vmatmul.f32.gmra.mxu0 %v220
      %v428 = vpop.f32.mrf.mxu0
      %v429 = vadd.f32 %v394, %v428
      %430 = vmatmul.f32.gmra.mxu0 %v227
      %v431 = vpop.f32.mrf.mxu0
      %v432 = vadd.f32 %v397, %v431
      %433 = vmatmul.f32.gmra.mxu0 %v234
      %v434 = vpop.f32.mrf.mxu0
      %v435 = vadd.f32 %v400, %v434
      %436 = vdwg.mxu0
      %437 = vmatpush.msra.mxu0 %v287
      %438 = vmatpush.msra.mxu0 %v286
      %439 = vmatpush.msra.mxu0 %v285
      %440 = vmatpush.msra.mxu0 %v284
      %441 = vmatpush.msra.mxu0 %v283
      %442 = vmatpush.msra.mxu0 %v282
      %443 = vmatpush.msra.mxu0 %v281
      %444 = vmatpush.msra.mxu0 %v280
      %445 = vmatpush.msra.mxu0 %v279
      %446 = vmatpush.msra.mxu0 %v278
      %447 = vmatpush.msra.mxu0 %v277
      %448 = vmatpush.msra.mxu0 %v276
      %449 = vmatpush.msra.mxu0 %v275
      %450 = vmatpush.msra.mxu0 %v274
      %451 = vmatpush.msra.mxu0 %v273
      %452 = vmatpush.msra.mxu0 %v272
      %453 = vmatmul.f32.gmra.mxu0 %v200
      %v454 = vpop.f32.mrf.mxu0
      %v455 = vadd.f32 %v420, %v454
      %456 = vmatmul.f32.gmra.mxu0 %v207
      %v457 = vpop.f32.mrf.mxu0
      %v458 = vadd.f32 %v423, %v457
      %459 = vmatmul.f32.gmra.mxu0 %v214
      %v460 = vpop.f32.mrf.mxu0
      %v461 = vadd.f32 %v426, %v460
      %462 = vmatmul.f32.gmra.mxu0 %v221
      %v463 = vpop.f32.mrf.mxu0
      %v464 = vadd.f32 %v429, %v463
      %465 = vmatmul.f32.gmra.mxu0 %v228
      %v466 = vpop.f32.mrf.mxu0
      %v467 = vadd.f32 %v432, %v466
      %468 = vmatmul.f32.gmra.mxu0 %v235
      %v469 = vpop.f32.mrf.mxu0
      %v470 = vadd.f32 %v435, %v469
      %471 = vdwg.mxu0
      %472 = vmatpush.msra.mxu0 %v303
      %473 = vmatpush.msra.mxu0 %v302
      %474 = vmatpush.msra.mxu0 %v301
      %475 = vmatpush.msra.mxu0 %v300
      %476 = vmatpush.msra.mxu0 %v299
      %477 = vmatpush.msra.mxu0 %v298
      %478 = vmatpush.msra.mxu0 %v297
      %479 = vmatpush.msra.mxu0 %v296
      %480 = vmatpush.msra.mxu0 %v295
      %481 = vmatpush.msra.mxu0 %v294
      %482 = vmatpush.msra.mxu0 %v293
      %483 = vmatpush.msra.mxu0 %v292
      %484 = vmatpush.msra.mxu0 %v291
      %485 = vmatpush.msra.mxu0 %v290
      %486 = vmatpush.msra.mxu0 %v289
      %487 = vmatpush.msra.mxu0 %v288
      %488 = vmatmul.f32.gmra.mxu0 %v201
      %v489 = vpop.f32.mrf.mxu0
      %v490 = vadd.f32 %v455, %v489
      %491 = vmatmul.f32.gmra.mxu0 %v208
      %v492 = vpop.f32.mrf.mxu0
      %v493 = vadd.f32 %v458, %v492
      %494 = vmatmul.f32.gmra.mxu0 %v215
      %v495 = vpop.f32.mrf.mxu0
      %v496 = vadd.f32 %v461, %v495
      %497 = vmatmul.f32.gmra.mxu0 %v222
      %v498 = vpop.f32.mrf.mxu0
      %v499 = vadd.f32 %v464, %v498
      %500 = vmatmul.f32.gmra.mxu0 %v229
      %v501 = vpop.f32.mrf.mxu0
      %v502 = vadd.f32 %v467, %v501
      %503 = vmatmul.f32.gmra.mxu0 %v236
      %v504 = vpop.f32.mrf.mxu0
      %v505 = vadd.f32 %v470, %v504
      %506 = vdwg.mxu0
      %507 = vmatpush.msra.mxu0 %v319
      %508 = vmatpush.msra.mxu0 %v318
      %509 = vmatpush.msra.mxu0 %v317
      %510 = vmatpush.msra.mxu0 %v316
      %511 = vmatpush.msra.mxu0 %v315
      %512 = vmatpush.msra.mxu0 %v314
      %513 = vmatpush.msra.mxu0 %v313
      %514 = vmatpush.msra.mxu0 %v312
      %515 = vmatpush.msra.mxu0 %v311
      %516 = vmatpush.msra.mxu0 %v310
      %517 = vmatpush.msra.mxu0 %v309
      %518 = vmatpush.msra.mxu0 %v308
      %519 = vmatpush.msra.mxu0 %v307
      %520 = vmatpush.msra.mxu0 %v306
      %521 = vmatpush.msra.mxu0 %v305
      %522 = vmatpush.msra.mxu0 %v304
      %523 = vmatmul.f32.gmra.mxu0 %v202
      %v524 = vpop.f32.mrf.mxu0
      %v525 = vadd.f32 %v490, %v524
      %526 = vmatmul.f32.gmra.mxu0 %v209
      %v527 = vpop.f32.mrf.mxu0
      %v528 = vadd.f32 %v493, %v527
      %529 = vmatmul.f32.gmra.mxu0 %v216
      %v530 = vpop.f32.mrf.mxu0
      %v531 = vadd.f32 %v496, %v530
      %532 = vmatmul.f32.gmra.mxu0 %v223
      %v533 = vpop.f32.mrf.mxu0
      %v534 = vadd.f32 %v499, %v533
      %535 = vmatmul.f32.gmra.mxu0 %v230
      %v536 = vpop.f32.mrf.mxu0
      %v537 = vadd.f32 %v502, %v536
      %538 = vmatmul.f32.gmra.mxu0 %v237
      %v539 = vpop.f32.mrf.mxu0
      %v540 = vadd.f32 %v505, %v539
      %541 = vdwg.mxu0
      %542 = vmatpush.msra.mxu0 %v335
      %543 = vmatpush.msra.mxu0 %v334
      %544 = vmatpush.msra.mxu0 %v333
      %545 = vmatpush.msra.mxu0 %v332
      %546 = vmatpush.msra.mxu0 %v331
      %547 = vmatpush.msra.mxu0 %v330
      %548 = vmatpush.msra.mxu0 %v329
      %549 = vmatpush.msra.mxu0 %v328
      %550 = vmatpush.msra.mxu0 %v327
      %551 = vmatpush.msra.mxu0 %v326
      %552 = vmatpush.msra.mxu0 %v325
      %553 = vmatpush.msra.mxu0 %v324
      %554 = vmatpush.msra.mxu0 %v323
      %555 = vmatpush.msra.mxu0 %v322
      %556 = vmatpush.msra.mxu0 %v321
      %557 = vmatpush.msra.mxu0 %v320
      %558 = vmatmul.f32.gmra.mxu0 %v203
      %v559 = vpop.f32.mrf.mxu0
      %v560 = vadd.f32 %v525, %v559
      %561 = vmatmul.f32.gmra.mxu0 %v210
      %v562 = vpop.f32.mrf.mxu0
      %v563 = vadd.f32 %v528, %v562
      %564 = vmatmul.f32.gmra.mxu0 %v217
      %v565 = vpop.f32.mrf.mxu0
      %v566 = vadd.f32 %v531, %v565
      %567 = vmatmul.f32.gmra.mxu0 %v224
      %v568 = vpop.f32.mrf.mxu0
      %v569 = vadd.f32 %v534, %v568
      %570 = vmatmul.f32.gmra.mxu0 %v231
      %v571 = vpop.f32.mrf.mxu0
      %v572 = vadd.f32 %v537, %v571
      %573 = vmatmul.f32.gmra.mxu0 %v238
      %v574 = vpop.f32.mrf.mxu0
      %v575 = vadd.f32 %v540, %v574
      %576 = vdwg.mxu0
      %577 = vmatpush.msra.mxu0 0.0
      %578 = vmatpush.msra.mxu0 0.0
      %579 = vmatpush.msra.mxu0 0.0
      %580 = vmatpush.msra.mxu0 0.0
      %581 = vmatpush.msra.mxu0 %v347
      %582 = vmatpush.msra.mxu0 %v346
      %583 = vmatpush.msra.mxu0 %v345
      %584 = vmatpush.msra.mxu0 %v344
      %585 = vmatpush.msra.mxu0 %v343
      %586 = vmatpush.msra.mxu0 %v342
      %587 = vmatpush.msra.mxu0 %v341
      %588 = vmatpush.msra.mxu0 %v340
      %589 = vmatpush.msra.mxu0 %v339
      %590 = vmatpush.msra.mxu0 %v338
      %591 = vmatpush.msra.mxu0 %v337
      %592 = vmatpush.msra.mxu0 %v336
      %593 = vmatmul.f32.gmra.mxu0 %v350
      %v594 = vpop.f32.mrf.mxu0
      %v595 = vadd.f32 %v560, %v594
      %596 = vmatmul.f32.gmra.mxu0 %v353
      %v597 = vpop.f32.mrf.mxu0
      %v598 = vadd.f32 %v563, %v597
      %599 = vmatmul.f32.gmra.mxu0 %v356
      %v600 = vpop.f32.mrf.mxu0
      %v601 = vadd.f32 %v566, %v600
      %602 = vmatmul.f32.gmra.mxu0 %v359
      %v603 = vpop.f32.mrf.mxu0
      %v604 = vadd.f32 %v569, %v603
      %605 = vmatmul.f32.gmra.mxu0 %v362
      %v606 = vpop.f32.mrf.mxu0
      %v607 = vadd.f32 %v572, %v606
      %608 = vmatmul.f32.gmra.mxu0 %v365
      %v609 = vpop.f32.mrf.mxu0
      %v610 = vadd.f32 %v575, %v609
      %611 = vdwg.mxu0
      %v612 = vld [vmem:[%s3] sm:$0xff]
      %v613 = vld [vmem:[%s3 + $0x8] sm:$0xff]
      %vm614 = vcmask 130048
      %v616 = vsel %vm614, %v595, 0
      %v619 = vsel %vm614, %v598, 0
      %v622 = vsel %vm614, %v601, 0
      %v625 = vsel %vm614, %v604, 0
      %v628 = vsel %vm614, %v607, 0
      %v631 = vsel %vm614, %v610, 0
      %633 = vmatpush.msra.mxu0 0.0
      %634 = vmatpush.msra.mxu0 0.0
      %635 = vmatpush.msra.mxu0 0.0
      %636 = vmatpush.msra.mxu0 0.0
      %637 = vmatpush.msra.mxu0 0.0
      %638 = vmatpush.msra.mxu0 0.0
      %639 = vmatpush.msra.mxu0 0.0
      %640 = vmatpush.msra.mxu0 0.0
      %641 = vmatpush.msra.mxu0 0.0
      %642 = vmatpush.msra.mxu0 0.0
      %643 = vmatpush.msra.mxu0 0.0
      %644 = vmatpush.msra.mxu0 0.0
      %645 = vmatpush.msra.mxu0 0.0
      %646 = vmatpush.msra.mxu0 0.0
      %647 = vmatpush.msra.mxu0 %v613
      %648 = vmatpush.msra.mxu0 %v612
      %649 = vmatmul.f32.gmra.mxu0 %v616
      %v650 = vpop.f32.mrf.mxu0
      %v651 = vadd.f32 0.0, %v650
      %652 = vmatmul.f32.gmra.mxu0 %v619
      %v653 = vpop.f32.mrf.mxu0
      %v654 = vadd.f32 0.0, %v653
      %655 = vmatmul.f32.gmra.mxu0 %v622
      %v656 = vpop.f32.mrf.mxu0
      %v657 = vadd.f32 0.0, %v656
      %658 = vmatmul.f32.gmra.mxu0 %v625
      %v659 = vpop.f32.mrf.mxu0
      %v660 = vadd.f32 0.0, %v659
      %661 = vmatmul.f32.gmra.mxu0 %v628
      %v662 = vpop.f32.mrf.mxu0
      %v663 = vadd.f32 0.0, %v662
      %664 = vmatmul.f32.gmra.mxu0 %v631
      %v665 = vpop.f32.mrf.mxu0
      %v666 = vadd.f32 0.0, %v665
      %667 = vdwg.mxu0
      %v668 = vld [vmem:[%s2] sm:$0xff]
      %v669 = vld [vmem:[%s2 + $0x8] sm:$0xff]
      %v671 = vsel %vm614, %v668, 0
      %v674 = vsel %vm614, %v669, 0
      %676 = vmatpush.msra.mxu0 0.0
      %677 = vmatpush.msra.mxu0 0.0
      %678 = vmatpush.msra.mxu0 0.0
      %679 = vmatpush.msra.mxu0 0.0
      %680 = vmatpush.msra.mxu0 0.0
      %681 = vmatpush.msra.mxu0 0.0
      %682 = vmatpush.msra.mxu0 0.0
      %683 = vmatpush.msra.mxu0 0.0
      %684 = vmatpush.msra.mxu0 0.0
      %685 = vmatpush.msra.mxu0 0.0
      %686 = vmatpush.msra.mxu0 0.0
      %687 = vmatpush.msra.mxu0 0.0
      %688 = vmatpush.msra.mxu0 0.0
      %689 = vmatpush.msra.mxu0 0.0
      %690 = vmatpush.msra.mxu0 %v654
      %691 = vmatpush.msra.mxu0 %v651
      %692 = vmatmul.f32.gmra.mxu0 %v671
      %v693 = vpop.f32.mrf.mxu0
      %v694 = vadd.f32 0.0, %v693
      %695 = vmatmul.f32.gmra.mxu0 %v674
      %v696 = vpop.f32.mrf.mxu0
      %v697 = vadd.f32 0.0, %v696
      %698 = vdwg.mxu0
      %699 = vmatpush.msra.mxu0 0.0
      %700 = vmatpush.msra.mxu0 0.0
      %701 = vmatpush.msra.mxu0 0.0
      %702 = vmatpush.msra.mxu0 0.0
      %703 = vmatpush.msra.mxu0 0.0
      %704 = vmatpush.msra.mxu0 0.0
      %705 = vmatpush.msra.mxu0 0.0
      %706 = vmatpush.msra.mxu0 0.0
      %707 = vmatpush.msra.mxu0 0.0
      %708 = vmatpush.msra.mxu0 0.0
      %709 = vmatpush.msra.mxu0 0.0
      %710 = vmatpush.msra.mxu0 0.0
      %711 = vmatpush.msra.mxu0 0.0
      %712 = vmatpush.msra.mxu0 0.0
      %713 = vmatpush.msra.mxu0 %v660
      %714 = vmatpush.msra.mxu0 %v657
      %715 = vmatmul.f32.gmra.mxu0 %v671
      %v716 = vpop.f32.mrf.mxu0
      %v717 = vadd.f32 0.0, %v716
      %718 = vmatmul.f32.gmra.mxu0 %v674
      %v719 = vpop.f32.mrf.mxu0
      %v720 = vadd.f32 0.0, %v719
      %721 = vdwg.mxu0
      %722 = vmatpush.msra.mxu0 0.0
      %723 = vmatpush.msra.mxu0 0.0
      %724 = vmatpush.msra.mxu0 0.0
      %725 = vmatpush.msra.mxu0 0.0
      %726 = vmatpush.msra.mxu0 0.0
      %727 = vmatpush.msra.mxu0 0.0
      %728 = vmatpush.msra.mxu0 0.0
      %729 = vmatpush.msra.mxu0 0.0
      %730 = vmatpush.msra.mxu0 0.0
      %731 = vmatpush.msra.mxu0 0.0
      %732 = vmatpush.msra.mxu0 0.0
      %733 = vmatpush.msra.mxu0 0.0
      %734 = vmatpush.msra.mxu0 0.0
      %735 = vmatpush.msra.mxu0 0.0
      %736 = vmatpush.msra.mxu0 %v666
      %737 = vmatpush.msra.mxu0 %v663
      %738 = vmatmul.f32.gmra.mxu0 %v671
      %v739 = vpop.f32.mrf.mxu0
      %v740 = vadd.f32 0.0, %v739
      %741 = vmatmul.f32.gmra.mxu0 %v674
      %v742 = vpop.f32.mrf.mxu0
      %v743 = vadd.f32 0.0, %v742
      %744 = vdwg.mxu0
      %745 = vst.msk [vmem:[%s197] sm:$0xff] %vm614, %v694
      %746 = vst.msk [vmem:[%s197 + $0x8] sm:$0xff] %vm614, %v697
      %747 = vst.msk [vmem:[%s197 + $0x10] sm:$0xff] %vm614, %v717
      %748 = vst.msk [vmem:[%s197 + $0x18] sm:$0xff] %vm614, %v720
      %749 = vst.msk [vmem:[%s197 + $0x20] sm:$0xff] %vm614, %v740
      %750 = vst.msk [vmem:[%s197 + $0x28] sm:$0xff] %vm614, %v743
      %p751 = scmp.lt.s32.totalorder %s15, 1
      %s752 = scalar_select %p751, %s15, 1
      %s753 = smul.addr %s752, 6
      %s754 = smul.addr %s753, 8
      %s755 = scalar_lea.vmem %s4, %s754
      // Predicated region
      $region37: #{tpu_custom_call.1} parent=35 // pred_check
        %p756 = pneg %p122
      $region38: #{tpu_custom_call.1} parent=35 // pred_check_branch
        %758 = sbr.rel (%p756) target = $region40
      $region39: #{tpu_custom_call.1} parent=35 // pred_region
        _
      $region40: #{tpu_custom_call.1} parent=35 // pred_fallthru
        _
    $region36: #{tpu_custom_call.1} parent=5 // pred_fallthru
      _
    %p759 = scmp.le.s32.totalorder 2, %s10
    // Predicated region
    $region41: #{tpu_custom_call.1} parent=5 // pred_check
      %p760 = pneg %p759
    $region42: #{tpu_custom_call.1} parent=5 // pred_check_branch
      %762 = sbr.rel (%p760) target = $region44
    $region43: #{tpu_custom_call.1} parent=5 // pred_region
      %s763 = ssub.s32 %s10, 2
      // Predicated region
      $region45: #{tpu_custom_call.1} parent=43 // pred_check
        %p764 = pneg %p128
      $region46: #{tpu_custom_call.1} parent=43 // pred_check_branch
        %766 = sbr.rel (%p764) target = $region48
      $region47: #{tpu_custom_call.1} parent=43 // pred_region
        %p767 = scmp.lt.s32.totalorder %s16, 1
        %s768 = scalar_select %p767, %s16, 1
        %s769 = smul.addr %s768, 6
        %s770 = smul.addr %s769, 8
        %s771 = scalar_lea.vmem %s4, %s770
      $region48: #{tpu_custom_call.1} parent=43 // pred_fallthru
        _
    $region44: #{tpu_custom_call.1} parent=5 // pred_fallthru
      _
  $region6: #{tpu_custom_call.1} parent=0 // loop_footer
    %s14 = sadd.s32 1, %s10
  $region7: #{tpu_custom_call.1} parent=0 // loop_footer_branch
    %9 = sbr.rel target = $region3
  $region8: #{tpu_custom_call.1} parent=0 // loop_exit
    _

</llo_original>
